<compile_context>
chip_gen: v7x
topology: tpu7x:2x2x1
jax: 0.10.0
libtpu: 0.0.40
codegen_flags: <defaults>
</compile_context>

<pallas_src>
import functools

import jax
import jax.numpy as jnp
from jax import lax
from jax.experimental import pallas as pl
from jax.experimental.pallas import tpu as pltpu


def _model_kernel(x_ref, w_ih_ref, w_hh_ref, b_ref, w_head_ref, b_head_ref,
                  out_ref, gx_ref, *, batch, time_steps):
    H = w_hh_ref.shape[0]

    # ---- Phase 1: hoisted input projection (one MXU matmul) ----------------
    # x_ref is time-major (T*B, D); gate pre-activations for all steps are
    # computed once and parked in VMEM scratch (T*B, 4H) so the recurrence
    # only issues plain contiguous loads (off the serial dependence chain).
    gx_ref[...] = (
        jnp.dot(x_ref[...], w_ih_ref[...], preferred_element_type=jnp.float32)
        + b_ref[...])

    w_hh = w_hh_ref[...]

    # ---- Phase 2: sequential LSTM recurrence -------------------------------
    # State carried in vregs; loop fully unrolled (T=8) so the scheduler can
    # overlap MXU push / EUP / VPU work across iterations.
    h = jnp.zeros((batch, H), jnp.float32)
    c = jnp.zeros((batch, H), jnp.float32)
    acc = jnp.zeros((batch, H), jnp.float32)
    for t in range(time_steps):
        g_t = gx_ref[pl.ds(t * batch, batch), :]          # contiguous static slab
        gates = g_t + jnp.dot(h, w_hh, preferred_element_type=jnp.float32)
        # Full-width transcendentals first; slice afterwards (PyTorch LSTM
        # gate order [i, f, g, o]) so extracts feed cheap VPU ops.
        sig = jax.nn.sigmoid(gates)
        tnh = jnp.tanh(gates)
        i = sig[:, 0 * H:1 * H]
        f = sig[:, 1 * H:2 * H]
        g = tnh[:, 2 * H:3 * H]
        o = sig[:, 3 * H:4 * H]
        c = f * c + i * g
        h = o * jnp.tanh(c)
        acc = acc + h

    # ---- Phase 3: fused, lane-dense head ------------------------------------
    # acc @ [(W_emb @ W_fc)/T | 0-pad] + [b_emb @ W_fc + b_fc | 0-pad]
    out_ref[...] = (
        jnp.dot(acc, w_head_ref[...], preferred_element_type=jnp.float32)
        + b_head_ref[...])


@functools.partial(jax.jit, static_argnames=("out_dim",))
def model_wrapper_forward(x, w_ih, w_hh, b_gates, w_head, b_head, *, out_dim):
    """x: (B, T, D) float32 (batch_first, as in PyTorch)."""
    B, T, D = x.shape
    H = w_hh.shape[0]
    OUT_PAD = w_head.shape[1]

    # Time-major flatten so every step's gate block is a contiguous sublane
    # slab. (At realistic sizes, produce x time-major upstream instead.)
    x_tm = jnp.transpose(x.astype(jnp.float32), (1, 0, 2)).reshape(T * B, D)

    vmem = pl.BlockSpec(memory_space=pltpu.MemorySpace.VMEM)
    kernel = functools.partial(_model_kernel, batch=B, time_steps=T)
    out_padded = pl.pallas_call(
        kernel,
        out_shape=jax.ShapeDtypeStruct((B, OUT_PAD), jnp.float32),
        in_specs=[vmem] * 6,
        out_specs=vmem,
        scratch_shapes=[pltpu.VMEM((T * B, 4 * H), jnp.float32)],
    )(x_tm, w_ih, w_hh, b_gates, w_head, b_head)
    return out_padded[:, :out_dim]


def prepare_params(params, time_steps, out_pad=128):
    """One-time preprocessing: fold mean/embedder/fc into a padded affine head.

    Kept in f32 (folding is exact up to rounding; do NOT fold in bf16).
    """
    H = params["w_hh"].shape[0]
    OUT = params["w_fc"].shape[1]
    # Layout contract (see make_params): weights stored transposed as
    # (D,4H)/(H,4H), PyTorch [i,f,g,o] column order, b_gates = b_ih + b_hh.
    assert params["w_ih"].shape[1] == 4 * H
    assert params["w_hh"].shape == (H, 4 * H)
    assert params["b_gates"].shape == (1, 4 * H)

    w_head = (params["w_emb"] @ params["w_fc"]) / jnp.float32(time_steps)  # (H, OUT)
    b_head = params["b_emb"] @ params["w_fc"] + params["b_fc"]             # (1, OUT)
    # Zero-pad to a full 128-lane output slab (unmasked vst in the kernel).
    w_head_p = jnp.zeros((H, out_pad), jnp.float32).at[:, :OUT].set(w_head)
    b_head_p = jnp.zeros((1, out_pad), jnp.float32).at[:, :OUT].set(b_head)
    return {
        "w_ih": params["w_ih"].astype(jnp.float32),
        "w_hh": params["w_hh"].astype(jnp.float32),
        "b_gates": params["b_gates"].astype(jnp.float32),
        "w_head": w_head_p,
        "b_head": b_head_p,
        "out_dim": OUT,
    }


def make_params(key, D, H, L, OUT):
    ks = jax.random.split(key, 8)
    s = 0.1
    # PyTorch LSTM stores weight_ih_l0 (4H, D), weight_hh_l0 (4H, H); we keep
    # them transposed as (D, 4H) / (H, 4H) so the kernel does plain x @ W.
    w_ih = jax.random.normal(ks[0], (D, 4 * H), jnp.float32) * s
    w_hh = jax.random.normal(ks[1], (H, 4 * H), jnp.float32) * s
    b_ih = jax.random.normal(ks[2], (4 * H,), jnp.float32) * s
    b_hh = jax.random.normal(ks[3], (4 * H,), jnp.float32) * s
    w_emb = jax.random.normal(ks[4], (H, L), jnp.float32) * s   # embedder (H->L)
    b_emb = jax.random.normal(ks[5], (L,), jnp.float32) * s
    w_fc = jax.random.normal(ks[6], (L, OUT), jnp.float32) * s  # LazyLinear(25)
    b_fc = jax.random.normal(ks[7], (OUT,), jnp.float32) * s
    return {
        "w_ih": w_ih, "w_hh": w_hh,
        "b_gates": (b_ih + b_hh).reshape(1, 4 * H),
        "w_emb": w_emb, "b_emb": b_emb.reshape(1, L),
        "w_fc": w_fc, "b_fc": b_fc.reshape(1, OUT),
    }


def reference_forward(x, params):
    """Pure-JAX reference reproducing the PyTorch forward exactly (unfused)."""
    B, T, D = x.shape
    H = params["w_hh"].shape[0]

    def step(carry, x_t):
        h, c = carry
        gates = x_t @ params["w_ih"] + h @ params["w_hh"] + params["b_gates"]
        i = jax.nn.sigmoid(gates[:, 0 * H:1 * H])
        f = jax.nn.sigmoid(gates[:, 1 * H:2 * H])
        g = jnp.tanh(gates[:, 2 * H:3 * H])
        o = jax.nn.sigmoid(gates[:, 3 * H:4 * H])
        c = f * c + i * g
        h = o * jnp.tanh(c)
        return (h, c), h

    h0 = jnp.zeros((B, H), jnp.float32)
    c0 = jnp.zeros((B, H), jnp.float32)
    (_, _), hs = lax.scan(step, (h0, c0), jnp.transpose(x, (1, 0, 2)))
    rnn_mean = jnp.mean(hs, axis=0)                       # rnn_use_last=False
    emb = rnn_mean @ params["w_emb"] + params["b_emb"]    # embedder
    return emb @ params["w_fc"] + params["b_fc"]          # ModelWrapper.fc


if __name__ == "__main__":
    B, T, D, H, L, OUT = 2, 8, 16, 32, 16, 25

    key = jax.random.PRNGKey(0)
    kx, kp = jax.random.split(key)
    x = jax.random.normal(kx, (B, T, D), jnp.float32)
    params = make_params(kp, D, H, L, OUT)

    # One-time parameter preprocessing (head fold + lane padding), hoisted
    # out of the per-call forward path.
    prep = prepare_params(params, time_steps=T)

    out = jax.block_until_ready(
        model_wrapper_forward(
            x, prep["w_ih"], prep["w_hh"], prep["b_gates"],
            prep["w_head"], prep["b_head"], out_dim=prep["out_dim"]))

    ref = reference_forward(x, params)
    assert out.shape == (B, OUT)
    assert jnp.allclose(out, ref, atol=2e-5, rtol=2e-5), "mismatch vs JAX reference"

    print("KERNEL_OK")
</pallas_src>

<mosaic_0001>
module attributes {stable_mosaic.version = 11 : i64} {
  func.func @_model_kernel(%arg0: memref<16x16xf32, #tpu.memory_space<vmem>>, %arg1: memref<16x128xf32, #tpu.memory_space<vmem>>, %arg2: memref<32x128xf32, #tpu.memory_space<vmem>>, %arg3: memref<1x128xf32, #tpu.memory_space<vmem>>, %arg4: memref<32x128xf32, #tpu.memory_space<vmem>>, %arg5: memref<1x128xf32, #tpu.memory_space<vmem>>, %arg6: memref<2x128xf32, #tpu.memory_space<vmem>>, %arg7: memref<16x128xf32, #tpu.memory_space<vmem>>) attributes {dimension_semantics = [], scalar_prefetch = 0 : i64, scratch_operands = 1 : i64, tpu.core_type = #tpu.core_type<tc>} {
    %c0 = arith.constant 0 : index
    %c0_0 = arith.constant 0 : index
    %0 = vector.load %arg0[%c0, %c0_0] : memref<16x16xf32, #tpu.memory_space<vmem>>, vector<16x16xf32>
    %c0_1 = arith.constant 0 : index
    %c0_2 = arith.constant 0 : index
    %1 = vector.load %arg1[%c0_1, %c0_2] : memref<16x128xf32, #tpu.memory_space<vmem>>, vector<16x128xf32>
    %cst = arith.constant dense<0.000000e+00> : vector<16x128xf32>
    %2 = tpu.matmul %0, %1, %cst {dimension_numbers = #tpu.dot_dimension_numbers<[1], [0], [0], [1], [0, 0, 1, 1], [], []>} : vector<16x16xf32>, vector<16x128xf32>, vector<16x128xf32> -> vector<16x128xf32>
    %c0_3 = arith.constant 0 : index
    %c0_4 = arith.constant 0 : index
    %3 = vector.load %arg3[%c0_3, %c0_4] : memref<1x128xf32, #tpu.memory_space<vmem>>, vector<1x128xf32>
    %4 = vector.broadcast %3 : vector<1x128xf32> to vector<16x128xf32>
    %5 = arith.addf %2, %4 : vector<16x128xf32>
    %c0_5 = arith.constant 0 : index
    %c0_6 = arith.constant 0 : index
    %6 = vector.load %arg7[%c0_5, %c0_6] : memref<16x128xf32, #tpu.memory_space<vmem>>, vector<16x128xf32>
    tpu.vector_store %arg7[%c0_5, %c0_6], %5 {strides = array<i32>} : memref<16x128xf32, #tpu.memory_space<vmem>>, vector<16x128xf32>,
    %c0_7 = arith.constant 0 : index
    %c0_8 = arith.constant 0 : index
    %7 = vector.load %arg2[%c0_7, %c0_8] : memref<32x128xf32, #tpu.memory_space<vmem>>, vector<32x128xf32>
    %cst_9 = arith.constant 0.000000e+00 : f32
    %8 = vector.broadcast %cst_9 : f32 to vector<2x32xf32>
    %cst_10 = arith.constant 0.000000e+00 : f32
    %9 = vector.broadcast %cst_10 : f32 to vector<2x32xf32>
    %cst_11 = arith.constant 0.000000e+00 : f32
    %10 = vector.broadcast %cst_11 : f32 to vector<2x32xf32>
    %c0_12 = arith.constant 0 : index
    %c0_13 = arith.constant 0 : index
    %11 = vector.load %arg7[%c0_12, %c0_13] : memref<16x128xf32, #tpu.memory_space<vmem>>, vector<2x128xf32>
    %cst_14 = arith.constant dense<0.000000e+00> : vector<2x128xf32>
    %12 = tpu.matmul %8, %7, %cst_14 {dimension_numbers = #tpu.dot_dimension_numbers<[1], [0], [0], [1], [0, 0, 1, 1], [], []>} : vector<2x32xf32>, vector<32x128xf32>, vector<2x128xf32> -> vector<2x128xf32>
    %13 = arith.addf %11, %12 : vector<2x128xf32>
    %14 = arith.negf %13 : vector<2x128xf32>
    %15 = math.exp %14 : vector<2x128xf32>
    %cst_15 = arith.constant 1.000000e+00 : f32
    %16 = vector.broadcast %cst_15 : f32 to vector<2x128xf32>
    %17 = arith.addf %16, %15 : vector<2x128xf32>
    %18 = arith.divf %16, %17 : vector<2x128xf32>
    %19 = math.tanh %13 : vector<2x128xf32>
    %20 = vector.extract_strided_slice %18 {offsets = [0, 0], sizes = [2, 32], strides = [1, 1]} : vector<2x128xf32> to vector<2x32xf32>
    %21 = vector.extract_strided_slice %18 {offsets = [0, 32], sizes = [2, 32], strides = [1, 1]} : vector<2x128xf32> to vector<2x32xf32>
    %22 = vector.extract_strided_slice %19 {offsets = [0, 64], sizes = [2, 32], strides = [1, 1]} : vector<2x128xf32> to vector<2x32xf32>
    %23 = vector.extract_strided_slice %18 {offsets = [0, 96], sizes = [2, 32], strides = [1, 1]} : vector<2x128xf32> to vector<2x32xf32>
    %24 = arith.mulf %21, %9 : vector<2x32xf32>
    %25 = arith.mulf %20, %22 : vector<2x32xf32>
    %26 = arith.addf %24, %25 : vector<2x32xf32>
    %27 = math.tanh %26 : vector<2x32xf32>
    %28 = arith.mulf %23, %27 : vector<2x32xf32>
    %29 = arith.addf %10, %28 : vector<2x32xf32>
    %c2 = arith.constant 2 : index
    %c0_16 = arith.constant 0 : index
    %30 = vector.load %arg7[%c2, %c0_16] : memref<16x128xf32, #tpu.memory_space<vmem>>, vector<2x128xf32>
    %cst_17 = arith.constant dense<0.000000e+00> : vector<2x128xf32>
    %31 = tpu.matmul %28, %7, %cst_17 {dimension_numbers = #tpu.dot_dimension_numbers<[1], [0], [0], [1], [0, 0, 1, 1], [], []>} : vector<2x32xf32>, vector<32x128xf32>, vector<2x128xf32> -> vector<2x128xf32>
    %32 = arith.addf %30, %31 : vector<2x128xf32>
    %33 = arith.negf %32 : vector<2x128xf32>
    %34 = math.exp %33 : vector<2x128xf32>
    %cst_18 = arith.constant 1.000000e+00 : f32
    %35 = vector.broadcast %cst_18 : f32 to vector<2x128xf32>
    %36 = arith.addf %35, %34 : vector<2x128xf32>
    %37 = arith.divf %35, %36 : vector<2x128xf32>
    %38 = math.tanh %32 : vector<2x128xf32>
    %39 = vector.extract_strided_slice %37 {offsets = [0, 0], sizes = [2, 32], strides = [1, 1]} : vector<2x128xf32> to vector<2x32xf32>
    %40 = vector.extract_strided_slice %37 {offsets = [0, 32], sizes = [2, 32], strides = [1, 1]} : vector<2x128xf32> to vector<2x32xf32>
    %41 = vector.extract_strided_slice %38 {offsets = [0, 64], sizes = [2, 32], strides = [1, 1]} : vector<2x128xf32> to vector<2x32xf32>
    %42 = vector.extract_strided_slice %37 {offsets = [0, 96], sizes = [2, 32], strides = [1, 1]} : vector<2x128xf32> to vector<2x32xf32>
    %43 = arith.mulf %40, %26 : vector<2x32xf32>
    %44 = arith.mulf %39, %41 : vector<2x32xf32>
    %45 = arith.addf %43, %44 : vector<2x32xf32>
    %46 = math.tanh %45 : vector<2x32xf32>
    %47 = arith.mulf %42, %46 : vector<2x32xf32>
    %48 = arith.addf %29, %47 : vector<2x32xf32>
    %c4 = arith.constant 4 : index
    %c0_19 = arith.constant 0 : index
    %49 = vector.load %arg7[%c4, %c0_19] : memref<16x128xf32, #tpu.memory_space<vmem>>, vector<2x128xf32>
    %cst_20 = arith.constant dense<0.000000e+00> : vector<2x128xf32>
    %50 = tpu.matmul %47, %7, %cst_20 {dimension_numbers = #tpu.dot_dimension_numbers<[1], [0], [0], [1], [0, 0, 1, 1], [], []>} : vector<2x32xf32>, vector<32x128xf32>, vector<2x128xf32> -> vector<2x128xf32>
    %51 = arith.addf %49, %50 : vector<2x128xf32>
    %52 = arith.negf %51 : vector<2x128xf32>
    %53 = math.exp %52 : vector<2x128xf32>
    %cst_21 = arith.constant 1.000000e+00 : f32
    %54 = vector.broadcast %cst_21 : f32 to vector<2x128xf32>
    %55 = arith.addf %54, %53 : vector<2x128xf32>
    %56 = arith.divf %54, %55 : vector<2x128xf32>
    %57 = math.tanh %51 : vector<2x128xf32>
    %58 = vector.extract_strided_slice %56 {offsets = [0, 0], sizes = [2, 32], strides = [1, 1]} : vector<2x128xf32> to vector<2x32xf32>
    %59 = vector.extract_strided_slice %56 {offsets = [0, 32], sizes = [2, 32], strides = [1, 1]} : vector<2x128xf32> to vector<2x32xf32>
    %60 = vector.extract_strided_slice %57 {offsets = [0, 64], sizes = [2, 32], strides = [1, 1]} : vector<2x128xf32> to vector<2x32xf32>
    %61 = vector.extract_strided_slice %56 {offsets = [0, 96], sizes = [2, 32], strides = [1, 1]} : vector<2x128xf32> to vector<2x32xf32>
    %62 = arith.mulf %59, %45 : vector<2x32xf32>
    %63 = arith.mulf %58, %60 : vector<2x32xf32>
    %64 = arith.addf %62, %63 : vector<2x32xf32>
    %65 = math.tanh %64 : vector<2x32xf32>
    %66 = arith.mulf %61, %65 : vector<2x32xf32>
    %67 = arith.addf %48, %66 : vector<2x32xf32>
    %c6 = arith.constant 6 : index
    %c0_22 = arith.constant 0 : index
    %68 = vector.load %arg7[%c6, %c0_22] : memref<16x128xf32, #tpu.memory_space<vmem>>, vector<2x128xf32>
    %cst_23 = arith.constant dense<0.000000e+00> : vector<2x128xf32>
    %69 = tpu.matmul %66, %7, %cst_23 {dimension_numbers = #tpu.dot_dimension_numbers<[1], [0], [0], [1], [0, 0, 1, 1], [], []>} : vector<2x32xf32>, vector<32x128xf32>, vector<2x128xf32> -> vector<2x128xf32>
    %70 = arith.addf %68, %69 : vector<2x128xf32>
    %71 = arith.negf %70 : vector<2x128xf32>
    %72 = math.exp %71 : vector<2x128xf32>
    %cst_24 = arith.constant 1.000000e+00 : f32
    %73 = vector.broadcast %cst_24 : f32 to vector<2x128xf32>
    %74 = arith.addf %73, %72 : vector<2x128xf32>
    %75 = arith.divf %73, %74 : vector<2x128xf32>
    %76 = math.tanh %70 : vector<2x128xf32>
    %77 = vector.extract_strided_slice %75 {offsets = [0, 0], sizes = [2, 32], strides = [1, 1]} : vector<2x128xf32> to vector<2x32xf32>
    %78 = vector.extract_strided_slice %75 {offsets = [0, 32], sizes = [2, 32], strides = [1, 1]} : vector<2x128xf32> to vector<2x32xf32>
    %79 = vector.extract_strided_slice %76 {offsets = [0, 64], sizes = [2, 32], strides = [1, 1]} : vector<2x128xf32> to vector<2x32xf32>
    %80 = vector.extract_strided_slice %75 {offsets = [0, 96], sizes = [2, 32], strides = [1, 1]} : vector<2x128xf32> to vector<2x32xf32>
    %81 = arith.mulf %78, %64 : vector<2x32xf32>
    %82 = arith.mulf %77, %79 : vector<2x32xf32>
    %83 = arith.addf %81, %82 : vector<2x32xf32>
    %84 = math.tanh %83 : vector<2x32xf32>
    %85 = arith.mulf %80, %84 : vector<2x32xf32>
    %86 = arith.addf %67, %85 : vector<2x32xf32>
    %c8 = arith.constant 8 : index
    %c0_25 = arith.constant 0 : index
    %87 = vector.load %arg7[%c8, %c0_25] : memref<16x128xf32, #tpu.memory_space<vmem>>, vector<2x128xf32>
    %cst_26 = arith.constant dense<0.000000e+00> : vector<2x128xf32>
    %88 = tpu.matmul %85, %7, %cst_26 {dimension_numbers = #tpu.dot_dimension_numbers<[1], [0], [0], [1], [0, 0, 1, 1], [], []>} : vector<2x32xf32>, vector<32x128xf32>, vector<2x128xf32> -> vector<2x128xf32>
    %89 = arith.addf %87, %88 : vector<2x128xf32>
    %90 = arith.negf %89 : vector<2x128xf32>
    %91 = math.exp %90 : vector<2x128xf32>
    %cst_27 = arith.constant 1.000000e+00 : f32
    %92 = vector.broadcast %cst_27 : f32 to vector<2x128xf32>
    %93 = arith.addf %92, %91 : vector<2x128xf32>
    %94 = arith.divf %92, %93 : vector<2x128xf32>
    %95 = math.tanh %89 : vector<2x128xf32>
    %96 = vector.extract_strided_slice %94 {offsets = [0, 0], sizes = [2, 32], strides = [1, 1]} : vector<2x128xf32> to vector<2x32xf32>
    %97 = vector.extract_strided_slice %94 {offsets = [0, 32], sizes = [2, 32], strides = [1, 1]} : vector<2x128xf32> to vector<2x32xf32>
    %98 = vector.extract_strided_slice %95 {offsets = [0, 64], sizes = [2, 32], strides = [1, 1]} : vector<2x128xf32> to vector<2x32xf32>
    %99 = vector.extract_strided_slice %94 {offsets = [0, 96], sizes = [2, 32], strides = [1, 1]} : vector<2x128xf32> to vector<2x32xf32>
    %100 = arith.mulf %97, %83 : vector<2x32xf32>
    %101 = arith.mulf %96, %98 : vector<2x32xf32>
    %102 = arith.addf %100, %101 : vector<2x32xf32>
    %103 = math.tanh %102 : vector<2x32xf32>
    %104 = arith.mulf %99, %103 : vector<2x32xf32>
    %105 = arith.addf %86, %104 : vector<2x32xf32>
    %c10 = arith.constant 10 : index
    %c0_28 = arith.constant 0 : index
    %106 = vector.load %arg7[%c10, %c0_28] : memref<16x128xf32, #tpu.memory_space<vmem>>, vector<2x128xf32>
    %cst_29 = arith.constant dense<0.000000e+00> : vector<2x128xf32>
    %107 = tpu.matmul %104, %7, %cst_29 {dimension_numbers = #tpu.dot_dimension_numbers<[1], [0], [0], [1], [0, 0, 1, 1], [], []>} : vector<2x32xf32>, vector<32x128xf32>, vector<2x128xf32> -> vector<2x128xf32>
    %108 = arith.addf %106, %107 : vector<2x128xf32>
    %109 = arith.negf %108 : vector<2x128xf32>
    %110 = math.exp %109 : vector<2x128xf32>
    %cst_30 = arith.constant 1.000000e+00 : f32
    %111 = vector.broadcast %cst_30 : f32 to vector<2x128xf32>
    %112 = arith.addf %111, %110 : vector<2x128xf32>
    %113 = arith.divf %111, %112 : vector<2x128xf32>
    %114 = math.tanh %108 : vector<2x128xf32>
    %115 = vector.extract_strided_slice %113 {offsets = [0, 0], sizes = [2, 32], strides = [1, 1]} : vector<2x128xf32> to vector<2x32xf32>
    %116 = vector.extract_strided_slice %113 {offsets = [0, 32], sizes = [2, 32], strides = [1, 1]} : vector<2x128xf32> to vector<2x32xf32>
    %117 = vector.extract_strided_slice %114 {offsets = [0, 64], sizes = [2, 32], strides = [1, 1]} : vector<2x128xf32> to vector<2x32xf32>
    %118 = vector.extract_strided_slice %113 {offsets = [0, 96], sizes = [2, 32], strides = [1, 1]} : vector<2x128xf32> to vector<2x32xf32>
    %119 = arith.mulf %116, %102 : vector<2x32xf32>
    %120 = arith.mulf %115, %117 : vector<2x32xf32>
    %121 = arith.addf %119, %120 : vector<2x32xf32>
    %122 = math.tanh %121 : vector<2x32xf32>
    %123 = arith.mulf %118, %122 : vector<2x32xf32>
    %124 = arith.addf %105, %123 : vector<2x32xf32>
    %c12 = arith.constant 12 : index
    %c0_31 = arith.constant 0 : index
    %125 = vector.load %arg7[%c12, %c0_31] : memref<16x128xf32, #tpu.memory_space<vmem>>, vector<2x128xf32>
    %cst_32 = arith.constant dense<0.000000e+00> : vector<2x128xf32>
    %126 = tpu.matmul %123, %7, %cst_32 {dimension_numbers = #tpu.dot_dimension_numbers<[1], [0], [0], [1], [0, 0, 1, 1], [], []>} : vector<2x32xf32>, vector<32x128xf32>, vector<2x128xf32> -> vector<2x128xf32>
    %127 = arith.addf %125, %126 : vector<2x128xf32>
    %128 = arith.negf %127 : vector<2x128xf32>
    %129 = math.exp %128 : vector<2x128xf32>
    %cst_33 = arith.constant 1.000000e+00 : f32
    %130 = vector.broadcast %cst_33 : f32 to vector<2x128xf32>
    %131 = arith.addf %130, %129 : vector<2x128xf32>
    %132 = arith.divf %130, %131 : vector<2x128xf32>
    %133 = math.tanh %127 : vector<2x128xf32>
    %134 = vector.extract_strided_slice %132 {offsets = [0, 0], sizes = [2, 32], strides = [1, 1]} : vector<2x128xf32> to vector<2x32xf32>
    %135 = vector.extract_strided_slice %132 {offsets = [0, 32], sizes = [2, 32], strides = [1, 1]} : vector<2x128xf32> to vector<2x32xf32>
    %136 = vector.extract_strided_slice %133 {offsets = [0, 64], sizes = [2, 32], strides = [1, 1]} : vector<2x128xf32> to vector<2x32xf32>
    %137 = vector.extract_strided_slice %132 {offsets = [0, 96], sizes = [2, 32], strides = [1, 1]} : vector<2x128xf32> to vector<2x32xf32>
    %138 = arith.mulf %135, %121 : vector<2x32xf32>
    %139 = arith.mulf %134, %136 : vector<2x32xf32>
    %140 = arith.addf %138, %139 : vector<2x32xf32>
    %141 = math.tanh %140 : vector<2x32xf32>
    %142 = arith.mulf %137, %141 : vector<2x32xf32>
    %143 = arith.addf %124, %142 : vector<2x32xf32>
    %c14 = arith.constant 14 : index
    %c0_34 = arith.constant 0 : index
    %144 = vector.load %arg7[%c14, %c0_34] : memref<16x128xf32, #tpu.memory_space<vmem>>, vector<2x128xf32>
    %cst_35 = arith.constant dense<0.000000e+00> : vector<2x128xf32>
    %145 = tpu.matmul %142, %7, %cst_35 {dimension_numbers = #tpu.dot_dimension_numbers<[1], [0], [0], [1], [0, 0, 1, 1], [], []>} : vector<2x32xf32>, vector<32x128xf32>, vector<2x128xf32> -> vector<2x128xf32>
    %146 = arith.addf %144, %145 : vector<2x128xf32>
    %147 = arith.negf %146 : vector<2x128xf32>
    %148 = math.exp %147 : vector<2x128xf32>
    %cst_36 = arith.constant 1.000000e+00 : f32
    %149 = vector.broadcast %cst_36 : f32 to vector<2x128xf32>
    %150 = arith.addf %149, %148 : vector<2x128xf32>
    %151 = arith.divf %149, %150 : vector<2x128xf32>
    %152 = math.tanh %146 : vector<2x128xf32>
    %153 = vector.extract_strided_slice %151 {offsets = [0, 0], sizes = [2, 32], strides = [1, 1]} : vector<2x128xf32> to vector<2x32xf32>
    %154 = vector.extract_strided_slice %151 {offsets = [0, 32], sizes = [2, 32], strides = [1, 1]} : vector<2x128xf32> to vector<2x32xf32>
    %155 = vector.extract_strided_slice %152 {offsets = [0, 64], sizes = [2, 32], strides = [1, 1]} : vector<2x128xf32> to vector<2x32xf32>
    %156 = vector.extract_strided_slice %151 {offsets = [0, 96], sizes = [2, 32], strides = [1, 1]} : vector<2x128xf32> to vector<2x32xf32>
    %157 = arith.mulf %154, %140 : vector<2x32xf32>
    %158 = arith.mulf %153, %155 : vector<2x32xf32>
    %159 = arith.addf %157, %158 : vector<2x32xf32>
    %160 = math.tanh %159 : vector<2x32xf32>
    %161 = arith.mulf %156, %160 : vector<2x32xf32>
    %162 = arith.addf %143, %161 : vector<2x32xf32>
    %c0_37 = arith.constant 0 : index
    %c0_38 = arith.constant 0 : index
    %163 = vector.load %arg4[%c0_37, %c0_38] : memref<32x128xf32, #tpu.memory_space<vmem>>, vector<32x128xf32>
    %cst_39 = arith.constant dense<0.000000e+00> : vector<2x128xf32>
    %164 = tpu.matmul %162, %163, %cst_39 {dimension_numbers = #tpu.dot_dimension_numbers<[1], [0], [0], [1], [0, 0, 1, 1], [], []>} : vector<2x32xf32>, vector<32x128xf32>, vector<2x128xf32> -> vector<2x128xf32>
    %c0_40 = arith.constant 0 : index
    %c0_41 = arith.constant 0 : index
    %165 = vector.load %arg5[%c0_40, %c0_41] : memref<1x128xf32, #tpu.memory_space<vmem>>, vector<1x128xf32>
    %166 = vector.broadcast %165 : vector<1x128xf32> to vector<2x128xf32>
    %167 = arith.addf %164, %166 : vector<2x128xf32>
    %c0_42 = arith.constant 0 : index
    %c0_43 = arith.constant 0 : index
    %168 = vector.load %arg6[%c0_42, %c0_43] : memref<2x128xf32, #tpu.memory_space<vmem>>, vector<2x128xf32>
    tpu.vector_store %arg6[%c0_42, %c0_43], %167 {strides = array<i32>} : memref<2x128xf32, #tpu.memory_space<vmem>>, vector<2x128xf32>,
    return
  }
}

</mosaic_0001>

<llo_original>
// kernel: model_wrapper_forward.1
$region0: #{model_wrapper_forward.1}
  #allocation0 [shape = 'u32[]', space=smem, size = 0x4, offset = 0x4, fixed_abs, tag = 'smem constant byte address 0x4 - core index']
  #allocation1 [shape = 'u32[144,128]{1,0:T(1,128)}', space=vmem, size = 0x12000, scoped, tag = 'internal scratch']
  #allocation2 [shape = 'f32[16,128]{1,0:T(8,128)}', space=vmem, size = 0x2000, scoped, tag = 'scratch operand']
  %s0 = inlined_call_operand.vmem [shape: f32[16,16], index: 0, kind: input, shape index: {}]
  %s1 = inlined_call_operand.hbm [shape: f32[16,128], index: 1, kind: input, shape index: {}]
  %s2 = inlined_call_operand.vmem [shape: f32[32,128], index: 2, kind: input, shape index: {}]
  %s3 = inlined_call_operand.vmem [shape: f32[1,128], index: 3, kind: input, shape index: {}]
  %s4 = inlined_call_operand.hbm [shape: f32[32,128], index: 4, kind: input, shape index: {}]
  %s5 = inlined_call_operand.vmem [shape: f32[1,128], index: 5, kind: input, shape index: {}]
  %s6 = inlined_call_operand.hbm [shape: f32[2,128], index: 6, kind: output, shape index: {}]
  %s7 = sld [smem:[#allocation0]]
  $region42: #{model_wrapper_forward.1} parent=0
    _
  %s9 = ssub.s32 1, %s7
  %s10 = scalar_select 0, %s9, %s7
  $region1: #{model_wrapper_forward.1} parent=0
    #allocation3 [shape = 'u8[8192]{0}', space=vmem, size = 0x2000, scoped, tag = 'input window, operand 1, single buffered']
    #allocation4 [shape = 's32[1]{0}', space=sflag, size = 0x4, scoped, tag = 'scoped memory for model_wrapper_forward.1']
    #allocation5 [shape = 's32[1]{0}', space=sflag, size = 0x4, scoped, tag = 'scoped memory for model_wrapper_forward.1']
    #allocation6 [shape = 'u8[16384]{0}', space=vmem, size = 0x4000, scoped, tag = 'input window, operand 4, single buffered']
    #allocation7 [shape = 's32[1]{0}', space=sflag, size = 0x4, scoped, tag = 'scoped memory for model_wrapper_forward.1']
    #allocation8 [shape = 'u8[1024]{0}', space=vmem, size = 0x400, scoped, tag = 'output window, operand 0, single buffered']
    %11 = vsyncpa [#allocation4], 0
    %12 = vsyncpa [#allocation7], 0
    %13 = vsyncpa [#allocation5], 0
    // Predicated region
    $region2: #{model_wrapper_forward.1} parent=1 // pred_check
      _
    $region3: #{model_wrapper_forward.1} parent=1 // pred_check_branch
      %15 = sbr.rel (0) target = $region5
    $region4: #{model_wrapper_forward.1} parent=1 // pred_region
      _
    $region5: #{model_wrapper_forward.1} parent=1 // pred_fallthru
      _
    // Predicated region
    $region6: #{model_wrapper_forward.1} parent=1 // pred_check
      _
    $region7: #{model_wrapper_forward.1} parent=1 // pred_check_branch
      %17 = sbr.rel (0) target = $region9
    $region8: #{model_wrapper_forward.1} parent=1 // pred_region
      %s19 = ssub.s32 256, 256
      %20 = vsyncadd [#allocation4], %s19
      %s21 = sshll.u32 [#allocation3], 4
      %s22 = int_to_ptr.vmem [resolvable:$true] %s21
      %27 = dma.hbm_to_vmem [thread:$0]  %s1, 256, %s22, [#allocation4], 128, 128, 8
    $region9: #{model_wrapper_forward.1} parent=1 // pred_fallthru
      _
    // Predicated region
    $region10: #{model_wrapper_forward.1} parent=1 // pred_check
      _
    $region11: #{model_wrapper_forward.1} parent=1 // pred_check_branch
      %29 = sbr.rel (0) target = $region13
    $region12: #{model_wrapper_forward.1} parent=1 // pred_region
      _
    $region13: #{model_wrapper_forward.1} parent=1 // pred_fallthru
      _
    // Predicated region
    $region14: #{model_wrapper_forward.1} parent=1 // pred_check
      _
    $region15: #{model_wrapper_forward.1} parent=1 // pred_check_branch
      %31 = sbr.rel (0) target = $region17
    $region16: #{model_wrapper_forward.1} parent=1 // pred_region
      _
    $region17: #{model_wrapper_forward.1} parent=1 // pred_fallthru
      _
    // Predicated region
    $region18: #{model_wrapper_forward.1} parent=1 // pred_check
      _
    $region19: #{model_wrapper_forward.1} parent=1 // pred_check_branch
      %33 = sbr.rel (0) target = $region21
    $region20: #{model_wrapper_forward.1} parent=1 // pred_region
      %s35 = ssub.s32 512, 512
      %36 = vsyncadd [#allocation7], %s35
      %s37 = sshll.u32 [#allocation6], 4
      %s38 = int_to_ptr.vmem [resolvable:$true] %s37
      %43 = dma.hbm_to_vmem [thread:$0]  %s4, 512, %s38, [#allocation7], 128, 128, 8
    $region21: #{model_wrapper_forward.1} parent=1 // pred_fallthru
      _
    // Predicated region
    $region22: #{model_wrapper_forward.1} parent=1 // pred_check
      _
    $region23: #{model_wrapper_forward.1} parent=1 // pred_check_branch
      %45 = sbr.rel (0) target = $region25
    $region24: #{model_wrapper_forward.1} parent=1 // pred_region
      _
    $region25: #{model_wrapper_forward.1} parent=1 // pred_fallthru
      _
    // Predicated region
    $region26: #{model_wrapper_forward.1} parent=1 // pred_check
      _
    $region27: #{model_wrapper_forward.1} parent=1 // pred_check_branch
      %47 = sbr.rel (0) target = $region29
    $region28: #{model_wrapper_forward.1} parent=1 // pred_region
      %48 = dma.done [#allocation4], 256
    $region29: #{model_wrapper_forward.1} parent=1 // pred_fallthru
      _
    // Predicated region
    $region30: #{model_wrapper_forward.1} parent=1 // pred_check
      _
    $region31: #{model_wrapper_forward.1} parent=1 // pred_check_branch
      %50 = sbr.rel (0) target = $region33
    $region32: #{model_wrapper_forward.1} parent=1 // pred_region
      %51 = dma.done [#allocation7], 512
    $region33: #{model_wrapper_forward.1} parent=1 // pred_fallthru
      _
    %v52 = vld [vmem:[%s0] sm:$0xff]
    %v53 = vld [vmem:[%s0 + $0x8] sm:$0xff]
    %v54 = vld [vmem:[#allocation3] sm:$0xff]
    %v55 = vld [vmem:[#allocation3 + $0x8] sm:$0xff]
    %v56 = vld [vmem:[%s3] sm:$0x1]
    %v58 = vlaneseq
    %v59 = vshrl.u32 %v58, 7
    %v60 = vsub.s32 0, %v59
    %v61 = vrot.slane %v56, %v60
    %vm63 = vcmask 130048
    %v65 = vsel %vm63, %v52, 0
    %v68 = vsel %vm63, %v53, 0
    %70 = vmatprep.subr.mxu0 0.0
    %71 = vmatpush1.msra.mxu0 %v54
    %72 = vmatprep.subr.mxu0 0.0
    %73 = vmatpush1.msra.mxu0 %v55
    %74 = vmatprep.subr.mxu0 0.0
    %75 = vmatpush1.msra.mxu0 0.0
    %76 = vmatprep.subr.mxu0 0.0
    %77 = vmatpush1.msra.mxu0 0.0
    %78 = vmatprep.subr.mxu0 0.0
    %79 = vmatpush1.msra.mxu0 0.0
    %80 = vmatprep.subr.mxu0 0.0
    %81 = vmatpush1.msra.mxu0 0.0
    %82 = vmatprep.subr.mxu0 0.0
    %83 = vmatpush1.msra.mxu0 0.0
    %84 = vmatprep.subr.mxu0 0.0
    %85 = vmatpush1.msra.mxu0 0.0
    %86 = vmatprep.subr.mxu0 0.0
    %87 = vmatpush1.msra.mxu0 0.0
    %88 = vmatprep.subr.mxu0 0.0
    %89 = vmatpush1.msra.mxu0 0.0
    %90 = vmatprep.subr.mxu0 0.0
    %91 = vmatpush1.msra.mxu0 0.0
    %92 = vmatprep.subr.mxu0 0.0
    %93 = vmatpush1.msra.mxu0 0.0
    %94 = vmatprep.subr.mxu0 0.0
    %95 = vmatpush1.msra.mxu0 0.0
    %96 = vmatprep.subr.mxu0 0.0
    %97 = vmatpush1.msra.mxu0 0.0
    %98 = vmatprep.subr.mxu0 0.0
    %99 = vmatpush1.msra.mxu0 0.0
    %100 = vmatprep.subr.mxu0 0.0
    %101 = vmatpush1.msra.mxu0 0.0
    %102 = vmatprep.subr.mxu0 0.0
    %103 = vmatpush1.msra.mxu0 0.0
    %104 = vmatprep.subr.mxu0 0.0
    %105 = vmatpush1.msra.mxu0 0.0
    %106 = vmatprep.subr.mxu0 0.0
    %107 = vmatpush1.msra.mxu0 0.0
    %108 = vmatprep.subr.mxu0 0.0
    %109 = vmatpush1.msra.mxu0 0.0
    %110 = vmatprep.subr.mxu0 0.0
    %111 = vmatpush1.msra.mxu0 0.0
    %112 = vmatprep.subr.mxu0 0.0
    %113 = vmatpush1.msra.mxu0 0.0
    %114 = vmatprep.subr.mxu0 0.0
    %115 = vmatpush1.msra.mxu0 0.0
    %116 = vmatprep.subr.mxu0 0.0
    %117 = vmatpush1.msra.mxu0 0.0
    %118 = vmatprep.subr.mxu0 0.0
    %119 = vmatpush1.msra.mxu0 0.0
    %120 = vmatprep.subr.mxu0 0.0
    %121 = vmatpush1.msra.mxu0 0.0
    %122 = vmatprep.subr.mxu0 0.0
    %123 = vmatpush1.msra.mxu0 0.0
    %124 = vmatprep.subr.mxu0 0.0
    %125 = vmatpush1.msra.mxu0 0.0
    %126 = vmatprep.subr.mxu0 0.0
    %127 = vmatpush1.msra.mxu0 0.0
    %128 = vmatprep.subr.mxu0 0.0
    %129 = vmatpush1.msra.mxu0 0.0
    %130 = vmatprep.subr.mxu0 0.0
    %131 = vmatpush1.msra.mxu0 0.0
    %132 = vmatprep.subr.mxu0 0.0
    %133 = vmatpush1.msra.mxu0 0.0
    %134 = vmatprep.mubr.f32.mxu0 0.0
    %135 = vmatmul.mubr.f32.gmra.mrb[0].mxu0 %v65
    %v136 = vpop.f32.mrb[0].mxu0
    %v137 = vadd.f32 %v61, %v136
    %v138 = vpop.f32.mrb[0].mxu0
    %139 = vmatprep.mubr.f32.mxu0 0.0
    %140 = vmatmul.mubr.f32.gmra.mrb[0].mxu0 %v68
    %v141 = vpop.f32.mrb[0].mxu0
    %v142 = vadd.f32 %v61, %v141
    %v143 = vpop.f32.mrb[0].mxu0
    %144 = vdwg.mxu0
    %145 = vst [vmem:[#allocation2] sm:$0xff] %v137
    %146 = vst [vmem:[#allocation2 + $0x8] sm:$0xff] %v142
    %v147 = vld [vmem:[%s2] sm:$0xff]
    %v148 = vld [vmem:[%s2 + $0x8] sm:$0xff]
    %v149 = vld [vmem:[%s2 + $0x10] sm:$0xff]
    %v150 = vld [vmem:[%s2 + $0x18] sm:$0xff]
    %v151 = vld [vmem:[#allocation2] sm:$0x3]
    %vm152 = vcmask 261120
    %v154 = vsel %vm152, 0.0, 0
    %156 = vmatprep.subr.mxu0 0.0
    %157 = vmatpush1.msra.mxu0 %v147
    %158 = vmatprep.subr.mxu0 0.0
    %159 = vmatpush1.msra.mxu0 %v148
    %160 = vmatprep.subr.mxu0 0.0
    %161 = vmatpush1.msra.mxu0 %v149
    %162 = vmatprep.subr.mxu0 0.0
    %163 = vmatpush1.msra.mxu0 %v150
    %164 = vmatprep.subr.mxu0 0.0
    %165 = vmatpush1.msra.mxu0 0.0
    %166 = vmatprep.subr.mxu0 0.0
    %167 = vmatpush1.msra.mxu0 0.0
    %168 = vmatprep.subr.mxu0 0.0
    %169 = vmatpush1.msra.mxu0 0.0
    %170 = vmatprep.subr.mxu0 0.0
    %171 = vmatpush1.msra.mxu0 0.0
    %172 = vmatprep.subr.mxu0 0.0
    %173 = vmatpush1.msra.mxu0 0.0
    %174 = vmatprep.subr.mxu0 0.0
    %175 = vmatpush1.msra.mxu0 0.0
    %176 = vmatprep.subr.mxu0 0.0
    %177 = vmatpush1.msra.mxu0 0.0
    %178 = vmatprep.subr.mxu0 0.0
    %179 = vmatpush1.msra.mxu0 0.0
    %180 = vmatprep.subr.mxu0 0.0
    %181 = vmatpush1.msra.mxu0 0.0
    %182 = vmatprep.subr.mxu0 0.0
    %183 = vmatpush1.msra.mxu0 0.0
    %184 = vmatprep.subr.mxu0 0.0
    %185 = vmatpush1.msra.mxu0 0.0
    %186 = vmatprep.subr.mxu0 0.0
    %187 = vmatpush1.msra.mxu0 0.0
    %188 = vmatprep.subr.mxu0 0.0
    %189 = vmatpush1.msra.mxu0 0.0
    %190 = vmatprep.subr.mxu0 0.0
    %191 = vmatpush1.msra.mxu0 0.0
    %192 = vmatprep.subr.mxu0 0.0
    %193 = vmatpush1.msra.mxu0 0.0
    %194 = vmatprep.subr.mxu0 0.0
    %195 = vmatpush1.msra.mxu0 0.0
    %196 = vmatprep.subr.mxu0 0.0
    %197 = vmatpush1.msra.mxu0 0.0
    %198 = vmatprep.subr.mxu0 0.0
    %199 = vmatpush1.msra.mxu0 0.0
    %200 = vmatprep.subr.mxu0 0.0
    %201 = vmatpush1.msra.mxu0 0.0
    %202 = vmatprep.subr.mxu0 0.0
    %203 = vmatpush1.msra.mxu0 0.0
    %204 = vmatprep.subr.mxu0 0.0
    %205 = vmatpush1.msra.mxu0 0.0
    %206 = vmatprep.subr.mxu0 0.0
    %207 = vmatpush1.msra.mxu0 0.0
    %208 = vmatprep.subr.mxu0 0.0
    %209 = vmatpush1.msra.mxu0 0.0
    %210 = vmatprep.subr.mxu0 0.0
    %211 = vmatpush1.msra.mxu0 0.0
    %212 = vmatprep.subr.mxu0 0.0
    %213 = vmatpush1.msra.mxu0 0.0
    %214 = vmatprep.subr.mxu0 0.0
    %215 = vmatpush1.msra.mxu0 0.0
    %216 = vmatprep.subr.mxu0 0.0
    %217 = vmatpush1.msra.mxu0 0.0
    %218 = vmatprep.subr.mxu0 0.0
    %219 = vmatpush1.msra.mxu0 0.0
    %220 = vmatprep.mubr.f32.mxu0 0.0
    %221 = vmatmul.mubr.f32.gmra.mrb[0].mxu0 %v154
    %v222 = vpop.f32.mrb[0].mxu0
    %v223 = vadd.f32 0.0, %v222
    %v224 = vpop.f32.mrb[0].mxu0
    %225 = vdwg.mxu0
    %v226 = vadd.f32 %v151, %v223
    %v227 = vxor.u32 %v226, 2147483648
    %v228 = vmul.f32 %v227, 1.442695
    %v229 = vpow.pop %v228
    %v230 = vadd.f32 %v229, 1.0
    %v231 = vrcp.pop %v230
    %v232 = vmul.f32 1.0, %v231
    %v233 = vtanh.pop %v226
    %v234 = vmul.f32 %v232, 0.0
    %236 = vrot.lane.b32.xlu0 %v233, 64
    %v237 = vpop.permute.xlu0 %236
    %v239 = vmul.f32 %v232, %v237
    %241 = vrot.lane.b32.xlu0 %v239, 32
    %v242 = vpop.permute.xlu0 %241
    %v244 = vadd.f32 %v234, %v242
    %v245 = vtanh.pop %v244
    %247 = vrot.lane.b32.xlu0 %v245, 64
    %v248 = vpop.permute.xlu0 %247
    %v250 = vmul.f32 %v232, %v248
    %v251 = vadd.f32 %v250, 0.0
    %v252 = vld [vmem:[#allocation2 + $0x2] sm:$0x3]
    %254 = vrot.lane.b32.xlu0 %v250, 32
    %v255 = vpop.permute.xlu0 %254
    %v256 = vsel %vm152, %v255, 0
    %258 = vmatprep.subr.mxu0 0.0
    %259 = vmatpush1.msra.mxu0 %v147
    %260 = vmatprep.subr.mxu0 0.0
    %261 = vmatpush1.msra.mxu0 %v148
    %262 = vmatprep.subr.mxu0 0.0
    %263 = vmatpush1.msra.mxu0 %v149
    %264 = vmatprep.subr.mxu0 0.0
    %265 = vmatpush1.msra.mxu0 %v150
    %266 = vmatprep.subr.mxu0 0.0
    %267 = vmatpush1.msra.mxu0 0.0
    %268 = vmatprep.subr.mxu0 0.0
    %269 = vmatpush1.msra.mxu0 0.0
    %270 = vmatprep.subr.mxu0 0.0
    %271 = vmatpush1.msra.mxu0 0.0
    %272 = vmatprep.subr.mxu0 0.0
    %273 = vmatpush1.msra.mxu0 0.0
    %274 = vmatprep.subr.mxu0 0.0
    %275 = vmatpush1.msra.mxu0 0.0
    %276 = vmatprep.subr.mxu0 0.0
    %277 = vmatpush1.msra.mxu0 0.0
    %278 = vmatprep.subr.mxu0 0.0
    %279 = vmatpush1.msra.mxu0 0.0
    %280 = vmatprep.subr.mxu0 0.0
    %281 = vmatpush1.msra.mxu0 0.0
    %282 = vmatprep.subr.mxu0 0.0
    %283 = vmatpush1.msra.mxu0 0.0
    %284 = vmatprep.subr.mxu0 0.0
    %285 = vmatpush1.msra.mxu0 0.0
    %286 = vmatprep.subr.mxu0 0.0
    %287 = vmatpush1.msra.mxu0 0.0
    %288 = vmatprep.subr.mxu0 0.0
    %289 = vmatpush1.msra.mxu0 0.0
    %290 = vmatprep.subr.mxu0 0.0
    %291 = vmatpush1.msra.mxu0 0.0
    %292 = vmatprep.subr.mxu0 0.0
    %293 = vmatpush1.msra.mxu0 0.0
    %294 = vmatprep.subr.mxu0 0.0
    %295 = vmatpush1.msra.mxu0 0.0
    %296 = vmatprep.subr.mxu0 0.0
    %297 = vmatpush1.msra.mxu0 0.0
    %298 = vmatprep.subr.mxu0 0.0
    %299 = vmatpush1.msra.mxu0 0.0
    %300 = vmatprep.subr.mxu0 0.0
    %301 = vmatpush1.msra.mxu0 0.0
    %302 = vmatprep.subr.mxu0 0.0
    %303 = vmatpush1.msra.mxu0 0.0
    %304 = vmatprep.subr.mxu0 0.0
    %305 = vmatpush1.msra.mxu0 0.0
    %306 = vmatprep.subr.mxu0 0.0
    %307 = vmatpush1.msra.mxu0 0.0
    %308 = vmatprep.subr.mxu0 0.0
    %309 = vmatpush1.msra.mxu0 0.0
    %310 = vmatprep.subr.mxu0 0.0
    %311 = vmatpush1.msra.mxu0 0.0
    %312 = vmatprep.subr.mxu0 0.0
    %313 = vmatpush1.msra.mxu0 0.0
    %314 = vmatprep.subr.mxu0 0.0
    %315 = vmatpush1.msra.mxu0 0.0
    %316 = vmatprep.subr.mxu0 0.0
    %317 = vmatpush1.msra.mxu0 0.0
    %318 = vmatprep.subr.mxu0 0.0
    %319 = vmatpush1.msra.mxu0 0.0
    %320 = vmatprep.subr.mxu0 0.0
    %321 = vmatpush1.msra.mxu0 0.0
    %322 = vmatprep.mubr.f32.mxu0 0.0
    %323 = vmatmul.mubr.f32.gmra.mrb[0].mxu0 %v256
    %v324 = vpop.f32.mrb[0].mxu0
    %v325 = vadd.f32 0.0, %v324
    %v326 = vpop.f32.mrb[0].mxu0
    %327 = vdwg.mxu0
    %v328 = vadd.f32 %v252, %v325
    %v329 = vxor.u32 %v328, 2147483648
    %v330 = vmul.f32 %v329, 1.442695
    %v331 = vpow.pop %v330
    %v332 = vadd.f32 %v331, 1.0
    %v333 = vrcp.pop %v332
    %v334 = vmul.f32 1.0, %v333
    %v335 = vtanh.pop %v328
    %v336 = vmul.f32 %v334, %v244
    %338 = vrot.lane.b32.xlu0 %v335, 64
    %v339 = vpop.permute.xlu0 %338
    %v341 = vmul.f32 %v334, %v339
    %343 = vrot.lane.b32.xlu0 %v341, 32
    %v344 = vpop.permute.xlu0 %343
    %v346 = vadd.f32 %v336, %v344
    %v347 = vtanh.pop %v346
    %349 = vrot.lane.b32.xlu0 %v347, 64
    %v350 = vpop.permute.xlu0 %349
    %v352 = vmul.f32 %v334, %v350
    %v353 = vadd.f32 %v251, %v352
    %v354 = vld [vmem:[#allocation2 + $0x4] sm:$0x3]
    %356 = vrot.lane.b32.xlu0 %v352, 32
    %v357 = vpop.permute.xlu0 %356
    %v358 = vsel %vm152, %v357, 0
    %360 = vmatprep.subr.mxu0 0.0
    %361 = vmatpush1.msra.mxu0 %v147
    %362 = vmatprep.subr.mxu0 0.0
    %363 = vmatpush1.msra.mxu0 %v148
    %364 = vmatprep.subr.mxu0 0.0
    %365 = vmatpush1.msra.mxu0 %v149
    %366 = vmatprep.subr.mxu0 0.0
    %367 = vmatpush1.msra.mxu0 %v150
    %368 = vmatprep.subr.mxu0 0.0
    %369 = vmatpush1.msra.mxu0 0.0
    %370 = vmatprep.subr.mxu0 0.0
    %371 = vmatpush1.msra.mxu0 0.0
    %372 = vmatprep.subr.mxu0 0.0
    %373 = vmatpush1.msra.mxu0 0.0
    %374 = vmatprep.subr.mxu0 0.0
    %375 = vmatpush1.msra.mxu0 0.0
    %376 = vmatprep.subr.mxu0 0.0
    %377 = vmatpush1.msra.mxu0 0.0
    %378 = vmatprep.subr.mxu0 0.0
    %379 = vmatpush1.msra.mxu0 0.0
    %380 = vmatprep.subr.mxu0 0.0
    %381 = vmatpush1.msra.mxu0 0.0
    %382 = vmatprep.subr.mxu0 0.0
    %383 = vmatpush1.msra.mxu0 0.0
    %384 = vmatprep.subr.mxu0 0.0
    %385 = vmatpush1.msra.mxu0 0.0
    %386 = vmatprep.subr.mxu0 0.0
    %387 = vmatpush1.msra.mxu0 0.0
    %388 = vmatprep.subr.mxu0 0.0
    %389 = vmatpush1.msra.mxu0 0.0
    %390 = vmatprep.subr.mxu0 0.0
    %391 = vmatpush1.msra.mxu0 0.0
    %392 = vmatprep.subr.mxu0 0.0
    %393 = vmatpush1.msra.mxu0 0.0
    %394 = vmatprep.subr.mxu0 0.0
    %395 = vmatpush1.msra.mxu0 0.0
    %396 = vmatprep.subr.mxu0 0.0
    %397 = vmatpush1.msra.mxu0 0.0
    %398 = vmatprep.subr.mxu0 0.0
    %399 = vmatpush1.msra.mxu0 0.0
    %400 = vmatprep.subr.mxu0 0.0
    %401 = vmatpush1.msra.mxu0 0.0
    %402 = vmatprep.subr.mxu0 0.0
    %403 = vmatpush1.msra.mxu0 0.0
    %404 = vmatprep.subr.mxu0 0.0
    %405 = vmatpush1.msra.mxu0 0.0
    %406 = vmatprep.subr.mxu0 0.0
    %407 = vmatpush1.msra.mxu0 0.0
    %408 = vmatprep.subr.mxu0 0.0
    %409 = vmatpush1.msra.mxu0 0.0
    %410 = vmatprep.subr.mxu0 0.0
    %411 = vmatpush1.msra.mxu0 0.0
    %412 = vmatprep.subr.mxu0 0.0
    %413 = vmatpush1.msra.mxu0 0.0
    %414 = vmatprep.subr.mxu0 0.0
    %415 = vmatpush1.msra.mxu0 0.0
    %416 = vmatprep.subr.mxu0 0.0
    %417 = vmatpush1.msra.mxu0 0.0
    %418 = vmatprep.subr.mxu0 0.0
    %419 = vmatpush1.msra.mxu0 0.0
    %420 = vmatprep.subr.mxu0 0.0
    %421 = vmatpush1.msra.mxu0 0.0
    %422 = vmatprep.subr.mxu0 0.0
    %423 = vmatpush1.msra.mxu0 0.0
    %424 = vmatprep.mubr.f32.mxu0 0.0
    %425 = vmatmul.mubr.f32.gmra.mrb[0].mxu0 %v358
    %v426 = vpop.f32.mrb[0].mxu0
    %v427 = vadd.f32 0.0, %v426
    %v428 = vpop.f32.mrb[0].mxu0
    %429 = vdwg.mxu0
    %v430 = vadd.f32 %v354, %v427
    %v431 = vxor.u32 %v430, 2147483648
    %v432 = vmul.f32 %v431, 1.442695
    %v433 = vpow.pop %v432
    %v434 = vadd.f32 %v433, 1.0
    %v435 = vrcp.pop %v434
    %v436 = vmul.f32 1.0, %v435
    %v437 = vtanh.pop %v430
    %v438 = vmul.f32 %v436, %v346
    %440 = vrot.lane.b32.xlu0 %v437, 64
    %v441 = vpop.permute.xlu0 %440
    %v443 = vmul.f32 %v436, %v441
    %445 = vrot.lane.b32.xlu0 %v443, 32
    %v446 = vpop.permute.xlu0 %445
    %v448 = vadd.f32 %v438, %v446
    %v449 = vtanh.pop %v448
    %451 = vrot.lane.b32.xlu0 %v449, 64
    %v452 = vpop.permute.xlu0 %451
    %v454 = vmul.f32 %v436, %v452
    %v455 = vadd.f32 %v353, %v454
    %v456 = vld [vmem:[#allocation2 + $0x6] sm:$0x3]
    %458 = vrot.lane.b32.xlu0 %v454, 32
    %v459 = vpop.permute.xlu0 %458
    %v460 = vsel %vm152, %v459, 0
    %462 = vmatprep.subr.mxu0 0.0
    %463 = vmatpush1.msra.mxu0 %v147
    %464 = vmatprep.subr.mxu0 0.0
    %465 = vmatpush1.msra.mxu0 %v148
    %466 = vmatprep.subr.mxu0 0.0
    %467 = vmatpush1.msra.mxu0 %v149
    %468 = vmatprep.subr.mxu0 0.0
    %469 = vmatpush1.msra.mxu0 %v150
    %470 = vmatprep.subr.mxu0 0.0
    %471 = vmatpush1.msra.mxu0 0.0
    %472 = vmatprep.subr.mxu0 0.0
    %473 = vmatpush1.msra.mxu0 0.0
    %474 = vmatprep.subr.mxu0 0.0
    %475 = vmatpush1.msra.mxu0 0.0
    %476 = vmatprep.subr.mxu0 0.0
    %477 = vmatpush1.msra.mxu0 0.0
    %478 = vmatprep.subr.mxu0 0.0
    %479 = vmatpush1.msra.mxu0 0.0
    %480 = vmatprep.subr.mxu0 0.0
    %481 = vmatpush1.msra.mxu0 0.0
    %482 = vmatprep.subr.mxu0 0.0
    %483 = vmatpush1.msra.mxu0 0.0
    %484 = vmatprep.subr.mxu0 0.0
    %485 = vmatpush1.msra.mxu0 0.0
    %486 = vmatprep.subr.mxu0 0.0
    %487 = vmatpush1.msra.mxu0 0.0
    %488 = vmatprep.subr.mxu0 0.0
    %489 = vmatpush1.msra.mxu0 0.0
    %490 = vmatprep.subr.mxu0 0.0
    %491 = vmatpush1.msra.mxu0 0.0
    %492 = vmatprep.subr.mxu0 0.0
    %493 = vmatpush1.msra.mxu0 0.0
    %494 = vmatprep.subr.mxu0 0.0
    %495 = vmatpush1.msra.mxu0 0.0
    %496 = vmatprep.subr.mxu0 0.0
    %497 = vmatpush1.msra.mxu0 0.0
    %498 = vmatprep.subr.mxu0 0.0
    %499 = vmatpush1.msra.mxu0 0.0
    %500 = vmatprep.subr.mxu0 0.0
    %501 = vmatpush1.msra.mxu0 0.0
    %502 = vmatprep.subr.mxu0 0.0
    %503 = vmatpush1.msra.mxu0 0.0
    %504 = vmatprep.subr.mxu0 0.0
    %505 = vmatpush1.msra.mxu0 0.0
    %506 = vmatprep.subr.mxu0 0.0
    %507 = vmatpush1.msra.mxu0 0.0
    %508 = vmatprep.subr.mxu0 0.0
    %509 = vmatpush1.msra.mxu0 0.0
    %510 = vmatprep.subr.mxu0 0.0
    %511 = vmatpush1.msra.mxu0 0.0
    %512 = vmatprep.subr.mxu0 0.0
    %513 = vmatpush1.msra.mxu0 0.0
    %514 = vmatprep.subr.mxu0 0.0
    %515 = vmatpush1.msra.mxu0 0.0
    %516 = vmatprep.subr.mxu0 0.0
    %517 = vmatpush1.msra.mxu0 0.0
    %518 = vmatprep.subr.mxu0 0.0
    %519 = vmatpush1.msra.mxu0 0.0
    %520 = vmatprep.subr.mxu0 0.0
    %521 = vmatpush1.msra.mxu0 0.0
    %522 = vmatprep.subr.mxu0 0.0
    %523 = vmatpush1.msra.mxu0 0.0
    %524 = vmatprep.subr.mxu0 0.0
    %525 = vmatpush1.msra.mxu0 0.0
    %526 = vmatprep.mubr.f32.mxu0 0.0
    %527 = vmatmul.mubr.f32.gmra.mrb[0].mxu0 %v460
    %v528 = vpop.f32.mrb[0].mxu0
    %v529 = vadd.f32 0.0, %v528
    %v530 = vpop.f32.mrb[0].mxu0
    %531 = vdwg.mxu0
    %v532 = vadd.f32 %v456, %v529
    %v533 = vxor.u32 %v532, 2147483648
    %v534 = vmul.f32 %v533, 1.442695
    %v535 = vpow.pop %v534
    %v536 = vadd.f32 %v535, 1.0
    %v537 = vrcp.pop %v536
    %v538 = vmul.f32 1.0, %v537
    %v539 = vtanh.pop %v532
    %v540 = vmul.f32 %v538, %v448
    %542 = vrot.lane.b32.xlu0 %v539, 64
    %v543 = vpop.permute.xlu0 %542
    %v545 = vmul.f32 %v538, %v543
    %547 = vrot.lane.b32.xlu0 %v545, 32
    %v548 = vpop.permute.xlu0 %547
    %v550 = vadd.f32 %v540, %v548
    %v551 = vtanh.pop %v550
    %553 = vrot.lane.b32.xlu0 %v551, 64
    %v554 = vpop.permute.xlu0 %553
    %v556 = vmul.f32 %v538, %v554
    %v557 = vadd.f32 %v455, %v556
    %v558 = vld [vmem:[#allocation2 + $0x8] sm:$0x3]
    %560 = vrot.lane.b32.xlu0 %v556, 32
    %v561 = vpop.permute.xlu0 %560
    %v562 = vsel %vm152, %v561, 0
    %564 = vmatprep.subr.mxu0 0.0
    %565 = vmatpush1.msra.mxu0 %v147
    %566 = vmatprep.subr.mxu0 0.0
    %567 = vmatpush1.msra.mxu0 %v148
    %568 = vmatprep.subr.mxu0 0.0
    %569 = vmatpush1.msra.mxu0 %v149
    %570 = vmatprep.subr.mxu0 0.0
    %571 = vmatpush1.msra.mxu0 %v150
    %572 = vmatprep.subr.mxu0 0.0
    %573 = vmatpush1.msra.mxu0 0.0
    %574 = vmatprep.subr.mxu0 0.0
    %575 = vmatpush1.msra.mxu0 0.0
    %576 = vmatprep.subr.mxu0 0.0
    %577 = vmatpush1.msra.mxu0 0.0
    %578 = vmatprep.subr.mxu0 0.0
    %579 = vmatpush1.msra.mxu0 0.0
    %580 = vmatprep.subr.mxu0 0.0
    %581 = vmatpush1.msra.mxu0 0.0
    %582 = vmatprep.subr.mxu0 0.0
    %583 = vmatpush1.msra.mxu0 0.0
    %584 = vmatprep.subr.mxu0 0.0
    %585 = vmatpush1.msra.mxu0 0.0
    %586 = vmatprep.subr.mxu0 0.0
    %587 = vmatpush1.msra.mxu0 0.0
    %588 = vmatprep.subr.mxu0 0.0
    %589 = vmatpush1.msra.mxu0 0.0
    %590 = vmatprep.subr.mxu0 0.0
    %591 = vmatpush1.msra.mxu0 0.0
    %592 = vmatprep.subr.mxu0 0.0
    %593 = vmatpush1.msra.mxu0 0.0
    %594 = vmatprep.subr.mxu0 0.0
    %595 = vmatpush1.msra.mxu0 0.0
    %596 = vmatprep.subr.mxu0 0.0
    %597 = vmatpush1.msra.mxu0 0.0
    %598 = vmatprep.subr.mxu0 0.0
    %599 = vmatpush1.msra.mxu0 0.0
    %600 = vmatprep.subr.mxu0 0.0
    %601 = vmatpush1.msra.mxu0 0.0
    %602 = vmatprep.subr.mxu0 0.0
    %603 = vmatpush1.msra.mxu0 0.0
    %604 = vmatprep.subr.mxu0 0.0
    %605 = vmatpush1.msra.mxu0 0.0
    %606 = vmatprep.subr.mxu0 0.0
    %607 = vmatpush1.msra.mxu0 0.0
    %608 = vmatprep.subr.mxu0 0.0
    %609 = vmatpush1.msra.mxu0 0.0
    %610 = vmatprep.subr.mxu0 0.0
    %611 = vmatpush1.msra.mxu0 0.0
    %612 = vmatprep.subr.mxu0 0.0
    %613 = vmatpush1.msra.mxu0 0.0
    %614 = vmatprep.subr.mxu0 0.0
    %615 = vmatpush1.msra.mxu0 0.0
    %616 = vmatprep.subr.mxu0 0.0
    %617 = vmatpush1.msra.mxu0 0.0
    %618 = vmatprep.subr.mxu0 0.0
    %619 = vmatpush1.msra.mxu0 0.0
    %620 = vmatprep.subr.mxu0 0.0
    %621 = vmatpush1.msra.mxu0 0.0
    %622 = vmatprep.subr.mxu0 0.0
    %623 = vmatpush1.msra.mxu0 0.0
    %624 = vmatprep.subr.mxu0 0.0
    %625 = vmatpush1.msra.mxu0 0.0
    %626 = vmatprep.subr.mxu0 0.0
    %627 = vmatpush1.msra.mxu0 0.0
    %628 = vmatprep.mubr.f32.mxu0 0.0
    %629 = vmatmul.mubr.f32.gmra.mrb[0].mxu0 %v562
    %v630 = vpop.f32.mrb[0].mxu0
    %v631 = vadd.f32 0.0, %v630
    %v632 = vpop.f32.mrb[0].mxu0
    %633 = vdwg.mxu0
    %v634 = vadd.f32 %v558, %v631
    %v635 = vxor.u32 %v634, 2147483648
    %v636 = vmul.f32 %v635, 1.442695
    %v637 = vpow.pop %v636
    %v638 = vadd.f32 %v637, 1.0
    %v639 = vrcp.pop %v638
    %v640 = vmul.f32 1.0, %v639
    %v641 = vtanh.pop %v634
    %v642 = vmul.f32 %v640, %v550
    %644 = vrot.lane.b32.xlu0 %v641, 64
    %v645 = vpop.permute.xlu0 %644
    %v647 = vmul.f32 %v640, %v645
    %649 = vrot.lane.b32.xlu0 %v647, 32
    %v650 = vpop.permute.xlu0 %649
    %v652 = vadd.f32 %v642, %v650
    %v653 = vtanh.pop %v652
    %655 = vrot.lane.b32.xlu0 %v653, 64
    %v656 = vpop.permute.xlu0 %655
    %v658 = vmul.f32 %v640, %v656
    %v659 = vadd.f32 %v557, %v658
    %v660 = vld [vmem:[#allocation2 + $0xa] sm:$0x3]
    %662 = vrot.lane.b32.xlu0 %v658, 32
    %v663 = vpop.permute.xlu0 %662
    %v664 = vsel %vm152, %v663, 0
    %666 = vmatprep.subr.mxu0 0.0
    %667 = vmatpush1.msra.mxu0 %v147
    %668 = vmatprep.subr.mxu0 0.0
    %669 = vmatpush1.msra.mxu0 %v148
    %670 = vmatprep.subr.mxu0 0.0
    %671 = vmatpush1.msra.mxu0 %v149
    %672 = vmatprep.subr.mxu0 0.0
    %673 = vmatpush1.msra.mxu0 %v150
    %674 = vmatprep.subr.mxu0 0.0
    %675 = vmatpush1.msra.mxu0 0.0
    %676 = vmatprep.subr.mxu0 0.0
    %677 = vmatpush1.msra.mxu0 0.0
    %678 = vmatprep.subr.mxu0 0.0
    %679 = vmatpush1.msra.mxu0 0.0
    %680 = vmatprep.subr.mxu0 0.0
    %681 = vmatpush1.msra.mxu0 0.0
    %682 = vmatprep.subr.mxu0 0.0
    %683 = vmatpush1.msra.mxu0 0.0
    %684 = vmatprep.subr.mxu0 0.0
    %685 = vmatpush1.msra.mxu0 0.0
    %686 = vmatprep.subr.mxu0 0.0
    %687 = vmatpush1.msra.mxu0 0.0
    %688 = vmatprep.subr.mxu0 0.0
    %689 = vmatpush1.msra.mxu0 0.0
    %690 = vmatprep.subr.mxu0 0.0
    %691 = vmatpush1.msra.mxu0 0.0
    %692 = vmatprep.subr.mxu0 0.0
    %693 = vmatpush1.msra.mxu0 0.0
    %694 = vmatprep.subr.mxu0 0.0
    %695 = vmatpush1.msra.mxu0 0.0
    %696 = vmatprep.subr.mxu0 0.0
    %697 = vmatpush1.msra.mxu0 0.0
    %698 = vmatprep.subr.mxu0 0.0
    %699 = vmatpush1.msra.mxu0 0.0
    %700 = vmatprep.subr.mxu0 0.0
    %701 = vmatpush1.msra.mxu0 0.0
    %702 = vmatprep.subr.mxu0 0.0
    %703 = vmatpush1.msra.mxu0 0.0
    %704 = vmatprep.subr.mxu0 0.0
    %705 = vmatpush1.msra.mxu0 0.0
    %706 = vmatprep.subr.mxu0 0.0
    %707 = vmatpush1.msra.mxu0 0.0
    %708 = vmatprep.subr.mxu0 0.0
    %709 = vmatpush1.msra.mxu0 0.0
    %710 = vmatprep.subr.mxu0 0.0
    %711 = vmatpush1.msra.mxu0 0.0
    %712 = vmatprep.subr.mxu0 0.0
    %713 = vmatpush1.msra.mxu0 0.0
    %714 = vmatprep.subr.mxu0 0.0
    %715 = vmatpush1.msra.mxu0 0.0
    %716 = vmatprep.subr.mxu0 0.0
    %717 = vmatpush1.msra.mxu0 0.0
    %718 = vmatprep.subr.mxu0 0.0
    %719 = vmatpush1.msra.mxu0 0.0
    %720 = vmatprep.subr.mxu0 0.0
    %721 = vmatpush1.msra.mxu0 0.0
    %722 = vmatprep.subr.mxu0 0.0
    %723 = vmatpush1.msra.mxu0 0.0
    %724 = vmatprep.subr.mxu0 0.0
    %725 = vmatpush1.msra.mxu0 0.0
    %726 = vmatprep.subr.mxu0 0.0
    %727 = vmatpush1.msra.mxu0 0.0
    %728 = vmatprep.subr.mxu0 0.0
    %729 = vmatpush1.msra.mxu0 0.0
    %730 = vmatprep.mubr.f32.mxu0 0.0
    %731 = vmatmul.mubr.f32.gmra.mrb[0].mxu0 %v664
    %v732 = vpop.f32.mrb[0].mxu0
    %v733 = vadd.f32 0.0, %v732
    %v734 = vpop.f32.mrb[0].mxu0
    %735 = vdwg.mxu0
    %v736 = vadd.f32 %v660, %v733
    %v737 = vxor.u32 %v736, 2147483648
    %v738 = vmul.f32 %v737, 1.442695
    %v739 = vpow.pop %v738
    %v740 = vadd.f32 %v739, 1.0
    %v741 = vrcp.pop %v740
    %v742 = vmul.f32 1.0, %v741
    %v743 = vtanh.pop %v736
    %v744 = vmul.f32 %v742, %v652
    %746 = vrot.lane.b32.xlu0 %v743, 64
    %v747 = vpop.permute.xlu0 %746
    %v749 = vmul.f32 %v742, %v747
    %751 = vrot.lane.b32.xlu0 %v749, 32
    %v752 = vpop.permute.xlu0 %751
    %v754 = vadd.f32 %v744, %v752
    %v755 = vtanh.pop %v754
    %757 = vrot.lane.b32.xlu0 %v755, 64
    %v758 = vpop.permute.xlu0 %757
    %v760 = vmul.f32 %v742, %v758
    %v761 = vadd.f32 %v659, %v760
    %v762 = vld [vmem:[#allocation2 + $0xc] sm:$0x3]
    %764 = vrot.lane.b32.xlu0 %v760, 32
    %v765 = vpop.permute.xlu0 %764
    %v766 = vsel %vm152, %v765, 0
    %768 = vmatprep.subr.mxu0 0.0
    %769 = vmatpush1.msra.mxu0 %v147
    %770 = vmatprep.subr.mxu0 0.0
    %771 = vmatpush1.msra.mxu0 %v148
    %772 = vmatprep.subr.mxu0 0.0
    %773 = vmatpush1.msra.mxu0 %v149
    %774 = vmatprep.subr.mxu0 0.0
    %775 = vmatpush1.msra.mxu0 %v150
    %776 = vmatprep.subr.mxu0 0.0
    %777 = vmatpush1.msra.mxu0 0.0
    %778 = vmatprep.subr.mxu0 0.0
    %779 = vmatpush1.msra.mxu0 0.0
    %780 = vmatprep.subr.mxu0 0.0
    %781 = vmatpush1.msra.mxu0 0.0
    %782 = vmatprep.subr.mxu0 0.0
    %783 = vmatpush1.msra.mxu0 0.0
    %784 = vmatprep.subr.mxu0 0.0
    %785 = vmatpush1.msra.mxu0 0.0
    %786 = vmatprep.subr.mxu0 0.0
    %787 = vmatpush1.msra.mxu0 0.0
    %788 = vmatprep.subr.mxu0 0.0
    %789 = vmatpush1.msra.mxu0 0.0
    %790 = vmatprep.subr.mxu0 0.0
    %791 = vmatpush1.msra.mxu0 0.0
    %792 = vmatprep.subr.mxu0 0.0
    %793 = vmatpush1.msra.mxu0 0.0
    %794 = vmatprep.subr.mxu0 0.0
    %795 = vmatpush1.msra.mxu0 0.0
    %796 = vmatprep.subr.mxu0 0.0
    %797 = vmatpush1.msra.mxu0 0.0
    %798 = vmatprep.subr.mxu0 0.0
    %799 = vmatpush1.msra.mxu0 0.0
    %800 = vmatprep.subr.mxu0 0.0
    %801 = vmatpush1.msra.mxu0 0.0
    %802 = vmatprep.subr.mxu0 0.0
    %803 = vmatpush1.msra.mxu0 0.0
    %804 = vmatprep.subr.mxu0 0.0
    %805 = vmatpush1.msra.mxu0 0.0
    %806 = vmatprep.subr.mxu0 0.0
    %807 = vmatpush1.msra.mxu0 0.0
    %808 = vmatprep.subr.mxu0 0.0
    %809 = vmatpush1.msra.mxu0 0.0
    %810 = vmatprep.subr.mxu0 0.0
    %811 = vmatpush1.msra.mxu0 0.0
    %812 = vmatprep.subr.mxu0 0.0
    %813 = vmatpush1.msra.mxu0 0.0
    %814 = vmatprep.subr.mxu0 0.0
    %815 = vmatpush1.msra.mxu0 0.0
    %816 = vmatprep.subr.mxu0 0.0
    %817 = vmatpush1.msra.mxu0 0.0
    %818 = vmatprep.subr.mxu0 0.0
    %819 = vmatpush1.msra.mxu0 0.0
    %820 = vmatprep.subr.mxu0 0.0
    %821 = vmatpush1.msra.mxu0 0.0
    %822 = vmatprep.subr.mxu0 0.0
    %823 = vmatpush1.msra.mxu0 0.0
    %824 = vmatprep.subr.mxu0 0.0
    %825 = vmatpush1.msra.mxu0 0.0
    %826 = vmatprep.subr.mxu0 0.0
    %827 = vmatpush1.msra.mxu0 0.0
    %828 = vmatprep.subr.mxu0 0.0
    %829 = vmatpush1.msra.mxu0 0.0
    %830 = vmatprep.subr.mxu0 0.0
    %831 = vmatpush1.msra.mxu0 0.0
    %832 = vmatprep.mubr.f32.mxu0 0.0
    %833 = vmatmul.mubr.f32.gmra.mrb[0].mxu0 %v766
    %v834 = vpop.f32.mrb[0].mxu0
    %v835 = vadd.f32 0.0, %v834
    %v836 = vpop.f32.mrb[0].mxu0
    %837 = vdwg.mxu0
    %v838 = vadd.f32 %v762, %v835
    %v839 = vxor.u32 %v838, 2147483648
    %v840 = vmul.f32 %v839, 1.442695
    %v841 = vpow.pop %v840
    %v842 = vadd.f32 %v841, 1.0
    %v843 = vrcp.pop %v842
    %v844 = vmul.f32 1.0, %v843
    %v845 = vtanh.pop %v838
    %v846 = vmul.f32 %v844, %v754
    %848 = vrot.lane.b32.xlu0 %v845, 64
    %v849 = vpop.permute.xlu0 %848
    %v851 = vmul.f32 %v844, %v849
    %853 = vrot.lane.b32.xlu0 %v851, 32
    %v854 = vpop.permute.xlu0 %853
    %v856 = vadd.f32 %v846, %v854
    %v857 = vtanh.pop %v856
    %859 = vrot.lane.b32.xlu0 %v857, 64
    %v860 = vpop.permute.xlu0 %859
    %v862 = vmul.f32 %v844, %v860
    %v863 = vadd.f32 %v761, %v862
    %v864 = vld [vmem:[#allocation2 + $0xe] sm:$0x3]
    %866 = vrot.lane.b32.xlu0 %v862, 32
    %v867 = vpop.permute.xlu0 %866
    %v868 = vsel %vm152, %v867, 0
    %870 = vmatprep.subr.mxu0 0.0
    %871 = vmatpush1.msra.mxu0 %v147
    %872 = vmatprep.subr.mxu0 0.0
    %873 = vmatpush1.msra.mxu0 %v148
    %874 = vmatprep.subr.mxu0 0.0
    %875 = vmatpush1.msra.mxu0 %v149
    %876 = vmatprep.subr.mxu0 0.0
    %877 = vmatpush1.msra.mxu0 %v150
    %878 = vmatprep.subr.mxu0 0.0
    %879 = vmatpush1.msra.mxu0 0.0
    %880 = vmatprep.subr.mxu0 0.0
    %881 = vmatpush1.msra.mxu0 0.0
    %882 = vmatprep.subr.mxu0 0.0
    %883 = vmatpush1.msra.mxu0 0.0
    %884 = vmatprep.subr.mxu0 0.0
    %885 = vmatpush1.msra.mxu0 0.0
    %886 = vmatprep.subr.mxu0 0.0
    %887 = vmatpush1.msra.mxu0 0.0
    %888 = vmatprep.subr.mxu0 0.0
    %889 = vmatpush1.msra.mxu0 0.0
    %890 = vmatprep.subr.mxu0 0.0
    %891 = vmatpush1.msra.mxu0 0.0
    %892 = vmatprep.subr.mxu0 0.0
    %893 = vmatpush1.msra.mxu0 0.0
    %894 = vmatprep.subr.mxu0 0.0
    %895 = vmatpush1.msra.mxu0 0.0
    %896 = vmatprep.subr.mxu0 0.0
    %897 = vmatpush1.msra.mxu0 0.0
    %898 = vmatprep.subr.mxu0 0.0
    %899 = vmatpush1.msra.mxu0 0.0
    %900 = vmatprep.subr.mxu0 0.0
    %901 = vmatpush1.msra.mxu0 0.0
    %902 = vmatprep.subr.mxu0 0.0
    %903 = vmatpush1.msra.mxu0 0.0
    %904 = vmatprep.subr.mxu0 0.0
    %905 = vmatpush1.msra.mxu0 0.0
    %906 = vmatprep.subr.mxu0 0.0
    %907 = vmatpush1.msra.mxu0 0.0
    %908 = vmatprep.subr.mxu0 0.0
    %909 = vmatpush1.msra.mxu0 0.0
    %910 = vmatprep.subr.mxu0 0.0
    %911 = vmatpush1.msra.mxu0 0.0
    %912 = vmatprep.subr.mxu0 0.0
    %913 = vmatpush1.msra.mxu0 0.0
    %914 = vmatprep.subr.mxu0 0.0
    %915 = vmatpush1.msra.mxu0 0.0
    %916 = vmatprep.subr.mxu0 0.0
    %917 = vmatpush1.msra.mxu0 0.0
    %918 = vmatprep.subr.mxu0 0.0
    %919 = vmatpush1.msra.mxu0 0.0
    %920 = vmatprep.subr.mxu0 0.0
    %921 = vmatpush1.msra.mxu0 0.0
    %922 = vmatprep.subr.mxu0 0.0
    %923 = vmatpush1.msra.mxu0 0.0
    %924 = vmatprep.subr.mxu0 0.0
    %925 = vmatpush1.msra.mxu0 0.0
    %926 = vmatprep.subr.mxu0 0.0
    %927 = vmatpush1.msra.mxu0 0.0
    %928 = vmatprep.subr.mxu0 0.0
    %929 = vmatpush1.msra.mxu0 0.0
    %930 = vmatprep.subr.mxu0 0.0
    %931 = vmatpush1.msra.mxu0 0.0
    %932 = vmatprep.subr.mxu0 0.0
    %933 = vmatpush1.msra.mxu0 0.0
    %934 = vmatprep.mubr.f32.mxu0 0.0
    %935 = vmatmul.mubr.f32.gmra.mrb[0].mxu0 %v868
    %v936 = vpop.f32.mrb[0].mxu0
    %v937 = vadd.f32 0.0, %v936
    %v938 = vpop.f32.mrb[0].mxu0
    %939 = vdwg.mxu0
    %v940 = vadd.f32 %v864, %v937
    %v941 = vxor.u32 %v940, 2147483648
    %v942 = vmul.f32 %v941, 1.442695
    %v943 = vpow.pop %v942
    %v944 = vadd.f32 %v943, 1.0
    %v945 = vrcp.pop %v944
    %v946 = vmul.f32 1.0, %v945
    %v947 = vtanh.pop %v940
    %v948 = vmul.f32 %v946, %v856
    %950 = vrot.lane.b32.xlu0 %v947, 64
    %v951 = vpop.permute.xlu0 %950
    %v953 = vmul.f32 %v946, %v951
    %955 = vrot.lane.b32.xlu0 %v953, 32
    %v956 = vpop.permute.xlu0 %955
    %v958 = vadd.f32 %v948, %v956
    %v959 = vtanh.pop %v958
    %961 = vrot.lane.b32.xlu0 %v959, 64
    %v962 = vpop.permute.xlu0 %961
    %v964 = vmul.f32 %v946, %v962
    %v965 = vadd.f32 %v863, %v964
    %v966 = vld [vmem:[#allocation6] sm:$0xff]
    %v967 = vld [vmem:[#allocation6 + $0x8] sm:$0xff]
    %v968 = vld [vmem:[#allocation6 + $0x10] sm:$0xff]
    %v969 = vld [vmem:[#allocation6 + $0x18] sm:$0xff]
    %v970 = vld [vmem:[%s5] sm:$0x1]
    %v972 = vlaneseq
    %v973 = vshrl.u32 %v972, 7
    %v974 = vsub.s32 0, %v973
    %v975 = vrot.slane %v970, %v974
    %978 = vrot.lane.b32.xlu0 %v965, 32
    %v979 = vpop.permute.xlu0 %978
    %v980 = vsel %vm152, %v979, 0
    %982 = vmatprep.subr.mxu0 0.0
    %983 = vmatpush1.msra.mxu0 %v966
    %984 = vmatprep.subr.mxu0 0.0
    %985 = vmatpush1.msra.mxu0 %v967
    %986 = vmatprep.subr.mxu0 0.0
    %987 = vmatpush1.msra.mxu0 %v968
    %988 = vmatprep.subr.mxu0 0.0
    %989 = vmatpush1.msra.mxu0 %v969
    %990 = vmatprep.subr.mxu0 0.0
    %991 = vmatpush1.msra.mxu0 0.0
    %992 = vmatprep.subr.mxu0 0.0
    %993 = vmatpush1.msra.mxu0 0.0
    %994 = vmatprep.subr.mxu0 0.0
    %995 = vmatpush1.msra.mxu0 0.0
    %996 = vmatprep.subr.mxu0 0.0
    %997 = vmatpush1.msra.mxu0 0.0
    %998 = vmatprep.subr.mxu0 0.0
    %999 = vmatpush1.msra.mxu0 0.0
    %1000 = vmatprep.subr.mxu0 0.0
    %1001 = vmatpush1.msra.mxu0 0.0
    %1002 = vmatprep.subr.mxu0 0.0
    %1003 = vmatpush1.msra.mxu0 0.0
    %1004 = vmatprep.subr.mxu0 0.0
    %1005 = vmatpush1.msra.mxu0 0.0
    %1006 = vmatprep.subr.mxu0 0.0
    %1007 = vmatpush1.msra.mxu0 0.0
    %1008 = vmatprep.subr.mxu0 0.0
    %1009 = vmatpush1.msra.mxu0 0.0
    %1010 = vmatprep.subr.mxu0 0.0
    %1011 = vmatpush1.msra.mxu0 0.0
    %1012 = vmatprep.subr.mxu0 0.0
    %1013 = vmatpush1.msra.mxu0 0.0
    %1014 = vmatprep.subr.mxu0 0.0
    %1015 = vmatpush1.msra.mxu0 0.0
    %1016 = vmatprep.subr.mxu0 0.0
    %1017 = vmatpush1.msra.mxu0 0.0
    %1018 = vmatprep.subr.mxu0 0.0
    %1019 = vmatpush1.msra.mxu0 0.0
    %1020 = vmatprep.subr.mxu0 0.0
    %1021 = vmatpush1.msra.mxu0 0.0
    %1022 = vmatprep.subr.mxu0 0.0
    %1023 = vmatpush1.msra.mxu0 0.0
    %1024 = vmatprep.subr.mxu0 0.0
    %1025 = vmatpush1.msra.mxu0 0.0
    %1026 = vmatprep.subr.mxu0 0.0
    %1027 = vmatpush1.msra.mxu0 0.0
    %1028 = vmatprep.subr.mxu0 0.0
    %1029 = vmatpush1.msra.mxu0 0.0
    %1030 = vmatprep.subr.mxu0 0.0
    %1031 = vmatpush1.msra.mxu0 0.0
    %1032 = vmatprep.subr.mxu0 0.0
    %1033 = vmatpush1.msra.mxu0 0.0
    %1034 = vmatprep.subr.mxu0 0.0
    %1035 = vmatpush1.msra.mxu0 0.0
    %1036 = vmatprep.subr.mxu0 0.0
    %1037 = vmatpush1.msra.mxu0 0.0
    %1038 = vmatprep.subr.mxu0 0.0
    %1039 = vmatpush1.msra.mxu0 0.0
    %1040 = vmatprep.subr.mxu0 0.0
    %1041 = vmatpush1.msra.mxu0 0.0
    %1042 = vmatprep.subr.mxu0 0.0
    %1043 = vmatpush1.msra.mxu0 0.0
    %1044 = vmatprep.subr.mxu0 0.0
    %1045 = vmatpush1.msra.mxu0 0.0
    %1046 = vmatprep.mubr.f32.mxu0 0.0
    %1047 = vmatmul.mubr.f32.gmra.mrb[0].mxu0 %v980
    %v1048 = vpop.f32.mrb[0].mxu0
    %v1049 = vadd.f32 %v975, %v1048
    %v1050 = vpop.f32.mrb[0].mxu0
    %1051 = vdwg.mxu0
    %1052 = vst [vmem:[#allocation8] sm:$0x3] %v1049
    // Predicated region
    $region34: #{model_wrapper_forward.1} parent=1 // pred_check
      _
    $region35: #{model_wrapper_forward.1} parent=1 // pred_check_branch
      %1054 = sbr.rel (0) target = $region37
    $region36: #{model_wrapper_forward.1} parent=1 // pred_region
      %s1056 = ssub.s32 32, 32
      %1057 = vsyncadd [#allocation5], %s1056
      %s1059 = sshll.u32 [#allocation8], 4
      %s1060 = int_to_ptr.vmem [resolvable:$true] %s1059
      %1062 = dma.vmem_to_hbm [thread:$0]  %s1060, 32, %s6, [#allocation5]
    $region37: #{model_wrapper_forward.1} parent=1 // pred_fallthru
      _
    // Predicated region
    $region38: #{model_wrapper_forward.1} parent=1 // pred_check
      _
    $region39: #{model_wrapper_forward.1} parent=1 // pred_check_branch
      %1064 = sbr.rel (0) target = $region41
    $region40: #{model_wrapper_forward.1} parent=1 // pred_region
      %1065 = dma.done [#allocation5], 32
    $region41: #{model_wrapper_forward.1} parent=1 // pred_fallthru
      _
    %1066 = vsyncpa [#allocation4], 1
    %1067 = vsyncpa [#allocation7], 1
    %1068 = vsyncpa [#allocation5], 1

</llo_original>
